<compile_context>
chip_gen: v6e
topology: v6e:2x2x1
jax: 0.10.0
libtpu: 0.0.40
codegen_flags: <defaults>
</compile_context>

<pallas_src>
import functools

import jax
import jax.numpy as jnp
from jax import lax
from jax.experimental import pallas as pl
from jax.experimental.pallas import tpu as pltpu


def _round_up(v, m):
    return ((v + m - 1) // m) * m


def _vs_loss_kernel(x_ref, inv_delta_ref, iota_ref, picked_ref, out_ref, acc_ref,
                    *, n_valid):
    core = pl.program_id(0)
    i = pl.program_id(1)
    tiles_per_core = pl.num_programs(1)
    t = core * tiles_per_core + i            # logical batch-tile index
    tn = x_ref.shape[0]

    @pl.when(i == 0)
    def _init():
        acc_ref[...] = jnp.zeros_like(acc_ref)

    # Adjusted logits: x * (1/Delta) + iota, computed in f32 (bf16 upcast post-DMA).
    x = x_ref[...].astype(jnp.float32)                  # (TN, C)
    adj = x * inv_delta_ref[...] + iota_ref[...]        # (TN, C)

    # Numerically-stable logsumexp per row.
    m = jnp.max(adj, axis=-1, keepdims=True)                                 # (TN, 1)
    lse = m + jnp.log(jnp.sum(jnp.exp(adj - m), axis=-1, keepdims=True))     # (TN, 1)

    # Target logit was gathered + adjusted host-side: (TN, 1) f32.
    losses = lse - picked_ref[...]                                           # (TN, 1)

    # Mask rows of the ragged last tile and of the clamped duplicate tile.
    rows = lax.broadcasted_iota(jnp.int32, losses.shape, 0) + t * tn
    losses = jnp.where(rows < n_valid, losses, jnp.float32(0.0))

    acc_ref[...] += losses                     # per-row partials, no per-step reduce

    @pl.when(i == tiles_per_core - 1)
    def _finalize():
        out_ref[...] = jnp.full(out_ref.shape, jnp.sum(acc_ref[...]), jnp.float32)


def vs_loss(x, target, cls_num_list, gamma=0.3, tau=1.0, max_block_rows=1024):
    """x: (N, C) float32/bfloat16 logits, target: (N,) int labels."""
    n, c = x.shape
    cls_num_list = cls_num_list.astype(jnp.float32)

    # Parameter setup (glue, plain JAX) — mirrors VSLoss.__init__.
    cls_probs = cls_num_list / jnp.sum(cls_num_list)
    temp = (1.0 / cls_num_list) ** gamma
    delta = temp / jnp.min(temp)                            # Delta_list, shape (C,)
    inv_delta = (1.0 / delta).astype(jnp.float32)           # multiply in-kernel
    iota = (tau * jnp.log(cls_probs)).astype(jnp.float32)   # iota_list,  shape (C,)

    itemsize = jnp.dtype(x.dtype).itemsize
    sub = {4: 8, 2: 16, 1: 32}.get(itemsize, 8)   # dtype-native sublane multiple
    c_lane = _round_up(c, 128)                     # lane-padded width inside VMEM

    # Host-side gather of the adjusted target logit (O(N) only).
    tgt = target.astype(jnp.int32)
    x_t = jnp.take_along_axis(x, tgt[:, None], axis=-1).astype(jnp.float32)
    picked = x_t * jnp.take(inv_delta, tgt)[:, None] + jnp.take(iota, tgt)[:, None]

    # Batch tile size: budget covers the double-buffered x tile plus ~3 f32
    # (TN, C) intermediates plus the narrow (TN, 1) buffers; stays well inside
    # scoped VMEM on every generation (v7x: 64 MiB physical per TC).
    work_budget = 20 * 1024 * 1024
    row_bytes = c_lane * (2 * itemsize + 12) + 8 * 128 * 4
    if n <= sub:
        tn = n                                    # single block equal to full extent
    else:
        tn = max(sub, min(work_budget // row_bytes, max_block_rows,
                          _round_up(n, sub)) // sub * sub)

    n_tiles = pl.cdiv(n, tn)
    n_cores = 2 if n_tiles >= 2 else 1            # v7x 2-TC split; no-op on 1-TC chips
    tpc = pl.cdiv(n_tiles, n_cores)

    def tile_map(ci, ii):
        # Clamp the remainder step of an uneven core split onto a valid tile; the
        # in-kernel row mask zeroes its contribution.
        return (jnp.minimum(ci * tpc + ii, n_tiles - 1), 0)

    cost = pl.CostEstimate(
        flops=6 * n * c_lane,
        transcendentals=n * c_lane + n,
        bytes_accessed=n * c * itemsize + 8 * n + 8 * c + n_cores * 8 * 128 * 4,
    )

    out = pl.pallas_call(
        functools.partial(_vs_loss_kernel, n_valid=n),
        out_shape=jax.ShapeDtypeStruct((n_cores, 8, 128), jnp.float32),
        grid=(n_cores, tpc),
        in_specs=[
            pl.BlockSpec((tn, c), tile_map),                 # x tile (no host padding)
            pl.BlockSpec((1, c), lambda ci, ii: (0, 0)),     # 1/Delta row (resident)
            pl.BlockSpec((1, c), lambda ci, ii: (0, 0)),     # iota row (resident)
            pl.BlockSpec((tn, 1), tile_map),                 # adjusted target logits
        ],
        out_specs=pl.BlockSpec((1, 8, 128), lambda ci, ii: (ci, 0, 0)),
        scratch_shapes=[pltpu.VMEM((tn, 1), jnp.float32)],   # per-row partial sums
        compiler_params=pltpu.CompilerParams(
            dimension_semantics=("parallel", "arbitrary"),   # core split / batch reduce
            vmem_limit_bytes=40 * 1024 * 1024,
        ),
        cost_estimate=cost,
    )(x, inv_delta.reshape(1, c), iota.reshape(1, c), picked)

    return jnp.sum(out[:, 0, 0]) / jnp.float32(n)


def _vs_loss_ref(x, target, cls_num_list, gamma=0.3, tau=1.0):
    """Pure-JAX reference for correctness checking."""
    cls_num_list = cls_num_list.astype(jnp.float32)
    cls_probs = cls_num_list / jnp.sum(cls_num_list)
    temp = (1.0 / cls_num_list) ** gamma
    delta = temp / jnp.min(temp)
    iota = tau * jnp.log(cls_probs)
    out = x.astype(jnp.float32) / delta + iota
    logp = jax.nn.log_softmax(out, axis=-1)
    nll = -jnp.take_along_axis(logp, target[:, None], axis=-1)[:, 0]
    return jnp.mean(nll)


if __name__ == "__main__":
    key = jax.random.PRNGKey(0)
    N, C = 8, 16  # small shapes: batch=8, num_classes=16

    kx, kt = jax.random.split(key)
    x = jax.random.normal(kx, (N, C), dtype=jnp.float32)
    target = jax.random.randint(kt, (N,), 0, C, dtype=jnp.int32)

    # Deterministic synthetic class-count list (long-tailed-ish).
    cls_num_list = jnp.array(
        [100.0, 90.0, 80.0, 70.0, 60.0, 50.0, 40.0, 30.0,
         25.0, 20.0, 15.0, 10.0, 8.0, 6.0, 4.0, 2.0], dtype=jnp.float32)

    loss = vs_loss(x, target, cls_num_list, gamma=0.3, tau=1.0)
    jax.block_until_ready(loss)
    ref = _vs_loss_ref(x, target, cls_num_list, gamma=0.3, tau=1.0)
    assert jnp.allclose(loss, ref, atol=1e-5, rtol=1e-5), (loss, ref)

    # Second check: ragged batch/class dims + multi-tile grid + 2-wide core axis.
    N2, C2 = 100, 37
    kx2, kt2, kc2 = jax.random.split(jax.random.PRNGKey(1), 3)
    x2 = jax.random.normal(kx2, (N2, C2), dtype=jnp.float32)
    t2 = jax.random.randint(kt2, (N2,), 0, C2, dtype=jnp.int32)
    cls2 = jax.random.uniform(kc2, (C2,), minval=2.0, maxval=200.0,
                              dtype=jnp.float32)
    loss2 = vs_loss(x2, t2, cls2, gamma=0.3, tau=1.0, max_block_rows=8)
    jax.block_until_ready(loss2)
    ref2 = _vs_loss_ref(x2, t2, cls2, gamma=0.3, tau=1.0)
    assert jnp.allclose(loss2, ref2, atol=1e-5, rtol=1e-5), (loss2, ref2)

    print("KERNEL_OK")
</pallas_src>

<mosaic_0001>
module attributes {stable_mosaic.version = 11 : i64} {
  func.func @_vs_loss_kernel(%arg0: i32, %arg1: i32, %arg2: memref<8x16xf32, #tpu.memory_space<vmem>>, %arg3: memref<1x16xf32, #tpu.memory_space<vmem>>, %arg4: memref<1x16xf32, #tpu.memory_space<vmem>>, %arg5: memref<8x1xf32, #tpu.memory_space<vmem>>, %arg6: memref<1x8x128xf32, #tpu.memory_space<vmem>>, %arg7: memref<8x1xf32, #tpu.memory_space<vmem>>) attributes {dimension_semantics = [#tpu.dimension_semantics<parallel>, #tpu.dimension_semantics<arbitrary>], iteration_bounds = array<i64: 1, 1>, scalar_prefetch = 0 : i64, scratch_operands = 1 : i64, tpu.core_type = #tpu.core_type<tc>, window_params = [{transform_indices = @transform_0, window_bounds = array<i64: 8, 16>}, {pipeline_mode = #tpu.pipeline_mode<synchronous>, transform_indices = @transform_1, window_bounds = array<i64: 1, 16>}, {pipeline_mode = #tpu.pipeline_mode<synchronous>, transform_indices = @transform_2, window_bounds = array<i64: 1, 16>}, {transform_indices = @transform_3, window_bounds = array<i64: 8, 1>}, {transform_indices = @transform_4, window_bounds = array<i64: 1, 8, 128>}]} {
    %c1_i32 = arith.constant 1 : i32
    %0 = arith.muli %arg0, %c1_i32 : i32
    %1 = arith.addi %0, %arg1 : i32
    %c0_i32 = arith.constant 0 : i32
    %2 = arith.cmpi eq, %arg1, %c0_i32 : i32
    %3 = arith.extui %2 : i1 to i32
    %c0_i32_0 = arith.constant 0 : i32
    %4 = arith.cmpi ne, %3, %c0_i32_0 : i32
    scf.if %4 {
      %cst_17 = arith.constant 0.000000e+00 : f32
      %37 = vector.broadcast %cst_17 : f32 to vector<8x1xf32>
      %c0_18 = arith.constant 0 : index
      %c0_19 = arith.constant 0 : index
      %38 = vector.load %arg7[%c0_18, %c0_19] : memref<8x1xf32, #tpu.memory_space<vmem>>, vector<8x1xf32>
      tpu.vector_store %arg7[%c0_18, %c0_19], %37 {strides = array<i32>} : memref<8x1xf32, #tpu.memory_space<vmem>>, vector<8x1xf32>,
    } else {
    }
    %c0 = arith.constant 0 : index
    %c0_1 = arith.constant 0 : index
    %5 = vector.load %arg2[%c0, %c0_1] : memref<8x16xf32, #tpu.memory_space<vmem>>, vector<8x16xf32>
    %c0_2 = arith.constant 0 : index
    %c0_3 = arith.constant 0 : index
    %6 = vector.load %arg3[%c0_2, %c0_3] : memref<1x16xf32, #tpu.memory_space<vmem>>, vector<1x16xf32>
    %7 = vector.broadcast %6 : vector<1x16xf32> to vector<8x16xf32>
    %8 = arith.mulf %5, %7 : vector<8x16xf32>
    %c0_4 = arith.constant 0 : index
    %c0_5 = arith.constant 0 : index
    %9 = vector.load %arg4[%c0_4, %c0_5] : memref<1x16xf32, #tpu.memory_space<vmem>>, vector<1x16xf32>
    %10 = vector.broadcast %9 : vector<1x16xf32> to vector<8x16xf32>
    %11 = arith.addf %8, %10 : vector<8x16xf32>
    %cst = arith.constant dense<0xFF800000> : vector<8xf32>
    %12 = vector.multi_reduction <maximumf>, %11, %cst [1] : vector<8x16xf32> to vector<8xf32>
    %13 = vector.shape_cast %12 : vector<8xf32> to vector<8x1xf32>
    %14 = vector.broadcast %13 : vector<8x1xf32> to vector<8x16xf32>
    %15 = arith.subf %11, %14 : vector<8x16xf32>
    %16 = math.exp %15 : vector<8x16xf32>
    %cst_6 = arith.constant dense<0.000000e+00> : vector<8xf32>
    %17 = vector.multi_reduction <add>, %16, %cst_6 [1] : vector<8x16xf32> to vector<8xf32>
    %18 = vector.shape_cast %17 : vector<8xf32> to vector<8x1xf32>
    %19 = math.log %18 : vector<8x1xf32>
    %20 = arith.addf %13, %19 : vector<8x1xf32>
    %c0_7 = arith.constant 0 : index
    %c0_8 = arith.constant 0 : index
    %21 = vector.load %arg5[%c0_7, %c0_8] : memref<8x1xf32, #tpu.memory_space<vmem>>, vector<8x1xf32>
    %22 = arith.subf %20, %21 : vector<8x1xf32>
    %23 = tpu.iota {dimensions = array<i32: 0>} : vector<8x1xi32>
    %c8_i32 = arith.constant 8 : i32
    %24 = arith.muli %1, %c8_i32 : i32
    %25 = vector.broadcast %24 : i32 to vector<8x1xi32>
    %26 = arith.addi %23, %25 : vector<8x1xi32>
    %c8_i32_9 = arith.constant 8 : i32
    %27 = vector.broadcast %c8_i32_9 : i32 to vector<8x1xi32>
    %28 = arith.cmpi slt, %26, %27 : vector<8x1xi32>
    %cst_10 = arith.constant 0.000000e+00 : f32
    %29 = vector.broadcast %cst_10 : f32 to vector<8x1xf32>
    %30 = arith.select %28, %22, %29 : vector<8x1xi1>, vector<8x1xf32>
    %c0_11 = arith.constant 0 : index
    %c0_12 = arith.constant 0 : index
    %31 = vector.load %arg7[%c0_11, %c0_12] : memref<8x1xf32, #tpu.memory_space<vmem>>, vector<8x1xf32>
    %32 = arith.addf %31, %30 : vector<8x1xf32>
    %c0_13 = arith.constant 0 : index
    %c0_14 = arith.constant 0 : index
    %33 = vector.load %arg7[%c0_13, %c0_14] : memref<8x1xf32, #tpu.memory_space<vmem>>, vector<8x1xf32>
    tpu.vector_store %arg7[%c0_13, %c0_14], %32 {strides = array<i32>} : memref<8x1xf32, #tpu.memory_space<vmem>>, vector<8x1xf32>,
    %c0_i32_15 = arith.constant 0 : i32
    %34 = arith.cmpi eq, %arg1, %c0_i32_15 : i32
    %35 = arith.extui %34 : i1 to i32
    %c0_i32_16 = arith.constant 0 : i32
    %36 = arith.cmpi ne, %35, %c0_i32_16 : i32
    scf.if %36 {
      %c0_17 = arith.constant 0 : index
      %c0_18 = arith.constant 0 : index
      %37 = vector.load %arg7[%c0_17, %c0_18] : memref<8x1xf32, #tpu.memory_space<vmem>>, vector<8x1xf32>
      %38 = vector.shape_cast %37 : vector<8x1xf32> to vector<1x8x1xf32>
      %cst_19 = arith.constant dense<0.000000e+00> : vector<1xf32>
      %39 = vector.multi_reduction <add>, %38, %cst_19 [1, 2] : vector<1x8x1xf32> to vector<1xf32>
      %40 = vector.shape_cast %39 : vector<1xf32> to vector<1x1x1xf32>
      %41 = vector.extract %40[0, 0, 0] : f32 from vector<1x1x1xf32>
      %42 = vector.broadcast %41 : f32 to vector<1x8x128xf32>
      %c0_20 = arith.constant 0 : index
      %c0_21 = arith.constant 0 : index
      %c0_22 = arith.constant 0 : index
      %43 = vector.load %arg6[%c0_20, %c0_21, %c0_22] : memref<1x8x128xf32, #tpu.memory_space<vmem>>, vector<1x8x128xf32>
      tpu.vector_store %arg6[%c0_20, %c0_21, %c0_22], %42 {strides = array<i32>} : memref<1x8x128xf32, #tpu.memory_space<vmem>>, vector<1x8x128xf32>,
    } else {
    }
    return
  }
  func.func @transform_0(%arg0: i32, %arg1: i32) -> (i32, i32) {
    %c1_i32 = arith.constant 1 : i32
    %0 = arith.muli %arg0, %c1_i32 : i32
    %1 = arith.addi %0, %arg1 : i32
    %c0_i32 = arith.constant 0 : i32
    %2 = arith.minsi %1, %c0_i32 : i32
    %c0_i32_0 = arith.constant 0 : i32
    %c0_i32_1 = arith.constant 0 : i32
    return %2, %c0_i32_0 : i32, i32
  }
  func.func @transform_1(%arg0: i32, %arg1: i32) -> (i32, i32) {
    %c0_i32 = arith.constant 0 : i32
    %c0_i32_0 = arith.constant 0 : i32
    %c0_i32_1 = arith.constant 0 : i32
    return %c0_i32, %c0_i32_0 : i32, i32
  }
  func.func @transform_2(%arg0: i32, %arg1: i32) -> (i32, i32) {
    %c0_i32 = arith.constant 0 : i32
    %c0_i32_0 = arith.constant 0 : i32
    %c0_i32_1 = arith.constant 0 : i32
    return %c0_i32, %c0_i32_0 : i32, i32
  }
  func.func @transform_3(%arg0: i32, %arg1: i32) -> (i32, i32) {
    %c1_i32 = arith.constant 1 : i32
    %0 = arith.muli %arg0, %c1_i32 : i32
    %1 = arith.addi %0, %arg1 : i32
    %c0_i32 = arith.constant 0 : i32
    %2 = arith.minsi %1, %c0_i32 : i32
    %c0_i32_0 = arith.constant 0 : i32
    %c0_i32_1 = arith.constant 0 : i32
    return %2, %c0_i32_0 : i32, i32
  }
  func.func @transform_4(%arg0: i32, %arg1: i32) -> (i32, i32, i32) {
    %c0_i32 = arith.constant 0 : i32
    %c0_i32_0 = arith.constant 0 : i32
    %c0_i32_1 = arith.constant 0 : i32
    return %arg0, %c0_i32, %c0_i32_0 : i32, i32, i32
  }
}

</mosaic_0001>

<llo_original>
// kernel: tpu_custom_call.1
$region0: #{tpu_custom_call.1}
  #allocation0 [shape = 'u32[]', space=smem, size = 0x4, offset = 0x4, fixed_abs, tag = 'smem constant byte address 0x4 - core index']
  #allocation1 [shape = 'u32[144,128]{1,0:T(1,128)}', space=vmem, size = 0x12000, scoped, tag = 'internal scratch']
  #allocation2 [shape = 'f32[8,1]{1,0:T(8,128)}', space=vmem, size = 0x1000, scoped, tag = 'scratch operand']
  %s0 = inlined_call_operand.vmem [shape: f32[8,16], index: 0, kind: input, shape index: {}]
  %s1 = inlined_call_operand.vmem [shape: f32[1,16], index: 1, kind: input, shape index: {}]
  %s2 = inlined_call_operand.vmem [shape: f32[1,16], index: 2, kind: input, shape index: {}]
  %s3 = inlined_call_operand.vmem [shape: f32[8,1], index: 3, kind: input, shape index: {}]
  %s4 = inlined_call_operand.hbm [shape: f32[1,8,128], index: 4, kind: output, shape index: {}]
  %s5 = sld [smem:[#allocation0]]
  $region34: #{tpu_custom_call.1} parent=0
    _
  %s7 = ssub.s32 1, %s5
  %s8 = scalar_select 0, %s7, %s5
  $region1: #{tpu_custom_call.1} parent=0
    #allocation3 [shape = 'u8[4096]{0}', space=vmem, size = 0x1000, scoped, tag = 'output window, operand 0, single buffered']
    #allocation4 [shape = 's32[1]{0}', space=sflag, size = 0x4, scoped, tag = 'scoped memory for tpu_custom_call.1']
    %9 = vsyncpa [#allocation4], 0
    // Predicated region
    $region2: #{tpu_custom_call.1} parent=1 // pred_check
      _
    $region3: #{tpu_custom_call.1} parent=1 // pred_check_branch
      %11 = sbr.rel (0) target = $region5
    $region4: #{tpu_custom_call.1} parent=1 // pred_region
      %s12 = sadd.s32 0, 0
      %p13 = scmp.lt.s32.totalorder %s12, 0
      %s14 = scalar_select %p13, %s12, 0
      %p15 = scmp.lt.s32.totalorder %s14, 0
      %s16 = scalar_select %p15, %s14, 0
      %s17 = smul.addr %s16, 8
      %s18 = scalar_lea.vmem %s0, %s17
      %s19 = sadd.s32 0, 0
      %p20 = scmp.lt.s32.totalorder %s19, 0
      %s21 = scalar_select %p20, %s19, 0
    $region5: #{tpu_custom_call.1} parent=1 // pred_fallthru
      _
    // Predicated region
    $region6: #{tpu_custom_call.1} parent=1 // pred_check
      _
    $region7: #{tpu_custom_call.1} parent=1 // pred_check_branch
      %23 = sbr.rel (0) target = $region9
    $region8: #{tpu_custom_call.1} parent=1 // pred_region
      _
    $region9: #{tpu_custom_call.1} parent=1 // pred_fallthru
      _
    // Predicated region
    $region10: #{tpu_custom_call.1} parent=1 // pred_check
      _
    $region11: #{tpu_custom_call.1} parent=1 // pred_check_branch
      %25 = sbr.rel (0) target = $region13
    $region12: #{tpu_custom_call.1} parent=1 // pred_region
      _
    $region13: #{tpu_custom_call.1} parent=1 // pred_fallthru
      _
    // Predicated region
    $region14: #{tpu_custom_call.1} parent=1 // pred_check
      _
    $region15: #{tpu_custom_call.1} parent=1 // pred_check_branch
      %27 = sbr.rel (0) target = $region17
    $region16: #{tpu_custom_call.1} parent=1 // pred_region
      %s28 = sadd.s32 0, 0
      %p29 = scmp.lt.s32.totalorder %s28, 0
      %s30 = scalar_select %p29, %s28, 0
      %p31 = scmp.lt.s32.totalorder %s30, 0
      %s32 = scalar_select %p31, %s30, 0
      %s33 = smul.addr %s32, 8
      %s34 = scalar_lea.vmem %s3, %s33
      %s35 = sadd.s32 0, 0
      %p36 = scmp.lt.s32.totalorder %s35, 0
      %s37 = scalar_select %p36, %s35, 0
    $region17: #{tpu_custom_call.1} parent=1 // pred_fallthru
      _
    %s38 = sadd.s32 0, 0
    %p39 = scmp.lt.s32.totalorder %s38, 0
    %s40 = scalar_select %p39, %s38, 0
    %p41 = scmp.lt.s32.totalorder %s40, 0
    %s42 = scalar_select %p41, %s40, 0
    %s43 = smul.addr %s42, 8
    %s44 = scalar_lea.vmem %s0, %s43
    %s45 = sadd.s32 0, 0
    %p46 = scmp.lt.s32.totalorder %s45, 0
    %s47 = scalar_select %p46, %s45, 0
    %p48 = scmp.lt.s32.totalorder %s47, 0
    %s49 = scalar_select %p48, %s47, 0
    %s50 = smul.addr %s49, 8
    %s51 = scalar_lea.vmem %s3, %s50
    %s52 = sadd.s32 0, 0
    %p53 = scmp.lt.s32.totalorder %s52, 0
    %s54 = scalar_select %p53, %s52, 0
    %p55 = scmp.lt.s32.totalorder %s54, 0
    %s56 = scalar_select %p55, %s54, 0
    %s57 = smul.addr %s56, 8
    %s58 = scalar_lea.vmem %s0, %s57
    %s59 = sadd.s32 0, 0
    %p60 = scmp.lt.s32.totalorder %s59, 0
    %s61 = scalar_select %p60, %s59, 0
    %s62 = sadd.s32 0, 0
    %p63 = scmp.lt.s32.totalorder %s62, 0
    %s64 = scalar_select %p63, %s62, 0
    %p65 = scmp.lt.s32.totalorder %s64, 0
    %s66 = scalar_select %p65, %s64, 0
    %s67 = smul.addr %s66, 8
    %s68 = scalar_lea.vmem %s3, %s67
    %s69 = sadd.s32 0, 0
    %p70 = scmp.lt.s32.totalorder %s69, 0
    %s71 = scalar_select %p70, %s69, 0
    %s72 = sadd.s32 0, 0
    %p73 = scmp.eq.s32.totalorder 0, 0
    // Predicated region
    $region18: #{tpu_custom_call.1} parent=1 // pred_check
      %p74 = pneg %p73
    $region19: #{tpu_custom_call.1} parent=1 // pred_check_branch
      %76 = sbr.rel (%p74) target = $region21
    $region20: #{tpu_custom_call.1} parent=1 // pred_region
      %vm77 = vcmask 7168
      %78 = vst.msk [vmem:[#allocation2] sm:$0xff] %vm77, 0.0
    $region21: #{tpu_custom_call.1} parent=1 // pred_fallthru
      _
    %v79 = vld [vmem:[%s58] sm:$0xff]
    %v80 = vld [vmem:[%s1] sm:$0x1]
    %v82 = vlaneseq
    %v83 = vshrl.u32 %v82, 7
    %v84 = vsub.s32 0, %v83
    %v85 = vrot.slane %v80, %v84
    %v87 = vmul.f32 %v79, %v85
    %v88 = vld [vmem:[%s2] sm:$0x1]
    %v90 = vlaneseq
    %v91 = vshrl.u32 %v90, 7
    %v92 = vsub.s32 0, %v91
    %v93 = vrot.slane %v88, %v92
    %v95 = vadd.f32 %v87, %v93
    %vm96 = vcmask 130048
    %v97 = vsel %vm96, %v95, -inf
    %98 = vmax.xlane.f32.xlu0 %v97
    %v99 = vpop.xlane.xlu0 %98
    %v100 = vsub.f32 %v95, %v99
    %v101 = vmul.f32 %v100, 1.442695
    %v102 = vpow.pop %v101
    %v103 = vsel %vm96, %v102, 0.0
    %104 = vadd.xlane.f32.xlu0 %v103
    %v105 = vpop.xlane.xlu0 %104
    %v106 = vlog2.pop %v105
    %v107 = vmul.f32 %v106, 0.6931472
    %v108 = vadd.f32 %v99, %v107
    %v109 = vld [vmem:[%s68] sm:$0xff]
    %v110 = vsub.f32 %v108, %v109
    %v111 = vlaneseq
    %v112 = vshrl.u32 %v111, 7
    %s113 = smul.u32 %s72, 8
    %v114 = vstv %s113
    %v115 = vadd.s32 %v112, %v114
    %vm116 = vcmp.lt.s32.totalorder %v115, 8
    %v117 = vsel %vm116, %v110, 0.0
    %v118 = vld [vmem:[#allocation2] sm:$0xff]
    %v119 = vadd.f32 %v118, %v117
    %vm120 = vcmask 7168
    %121 = vst.msk [vmem:[#allocation2] sm:$0xff] %vm120, %v119
    // Predicated region
    $region22: #{tpu_custom_call.1} parent=1 // pred_check
      %p122 = pneg %p73
    $region23: #{tpu_custom_call.1} parent=1 // pred_check_branch
      %124 = sbr.rel (%p122) target = $region25
    $region24: #{tpu_custom_call.1} parent=1 // pred_region
      %v125 = vld [vmem:[#allocation2] sm:$0xff]
      %v126 = vsel %vm120, %v125, 0.0
      %127 = vadd.xlane.f32.xlu0 %v126
      %v128 = vpop.xlane.xlu0 %127
      %v129 = vrot.slane %v128, 4
      %v130 = vadd.f32 %v128, %v129
      %v131 = vrot.slane %v130, 2
      %v132 = vadd.f32 %v130, %v131
      %v133 = vrot.slane %v132, 1
      %v134 = vadd.f32 %v132, %v133
      %s135 = vtos %v134
      %v136 = vstv %s135
      %137 = vst [vmem:[#allocation3] sm:$0xff] %v136
    $region25: #{tpu_custom_call.1} parent=1 // pred_fallthru
      _
    // Predicated region
    $region26: #{tpu_custom_call.1} parent=1 // pred_check
      _
    $region27: #{tpu_custom_call.1} parent=1 // pred_check_branch
      %139 = sbr.rel (0) target = $region29
    $region28: #{tpu_custom_call.1} parent=1 // pred_region
      %s141 = ssub.s32 128, 128
      %142 = vsyncadd [#allocation4], %s141
      %s144 = sshll.u32 [#allocation3], 4
      %s145 = int_to_ptr.vmem [resolvable:$true] %s144
      %147 = dma.vmem_to_hbm [thread:$0]  %s145, 128, %s4, [#allocation4]
    $region29: #{tpu_custom_call.1} parent=1 // pred_fallthru
      _
    // Predicated region
    $region30: #{tpu_custom_call.1} parent=1 // pred_check
      _
    $region31: #{tpu_custom_call.1} parent=1 // pred_check_branch
      %149 = sbr.rel (0) target = $region33
    $region32: #{tpu_custom_call.1} parent=1 // pred_region
      %150 = dma.done [#allocation4], 128
    $region33: #{tpu_custom_call.1} parent=1 // pred_fallthru
      _
    %151 = vsyncpa [#allocation4], 1

</llo_original>
